<compile_context>
chip_gen: v6e
topology: v6e:2x2x1
jax: 0.10.0
libtpu: 0.0.40
codegen_flags: <defaults>
</compile_context>

<pallas_src>
import functools

import jax
import jax.numpy as jnp
from jax.experimental import pallas as pl
from jax.experimental.pallas import tpu as pltpu


def _round_up(a, b):
    return (a + b - 1) // b * b


def _bce_elementwise(x, y, pwm1=None):
    """Numerically-stable PyTorch BCEWithLogits per-element term (unscaled).

    softplus(-x) = max(-x, 0) + log1p(exp(-|x|))
    l = (1 - y) * x + (1 + (pos_weight - 1) * y) * softplus(-x)
    """
    sp_neg_x = jnp.maximum(-x, 0.0) + jnp.log1p(jnp.exp(-jnp.abs(x)))
    if pwm1 is None:
        return (1.0 - y) * x + sp_neg_x
    return (1.0 - y) * x + (1.0 + pwm1 * y) * sp_neg_x


def _fused_loss_kernel(x1_ref, y1_ref, x2_ref, y2_ref, pwm1_ref,
                       o_ref, acc1_ref, acc2_ref,
                       *, scale1, scale2, n_rows, row_tile,
                       blocks_per_core, any_padding):
    c = pl.program_id(0)                 # 2-way batch split ("parallel")
    i = pl.program_id(1)                 # row-block reduction ("arbitrary")
    last = pl.num_programs(1) - 1

    @pl.when(i == 0)
    def _init():
        acc1_ref[...] = jnp.zeros_like(acc1_ref)
        acc2_ref[...] = jnp.zeros_like(acc2_ref)

    x1 = x1_ref[...].astype(jnp.float32)         # (row_tile, C1)
    y1 = y1_ref[...].astype(jnp.float32)
    x2 = x2_ref[...].astype(jnp.float32)         # (row_tile, C2)
    y2 = y2_ref[...].astype(jnp.float32)
    pwm1 = pwm1_ref[...]                         # (1, C1) = pos_weight - 1

    per1 = _bce_elementwise(x1, y1, pwm1)        # (row_tile, C1)
    per2 = _bce_elementwise(x2, y2)              # (row_tile, C2)

    if any_padding:
        # Only blocks that actually contain rows >= n_rows pay for the mask.
        block_start = (c * blocks_per_core + i) * row_tile
        is_partial = block_start + row_tile > n_rows

        @pl.when(jnp.logical_not(is_partial))
        def _acc_full():
            acc1_ref[...] += per1
            acc2_ref[...] += per2

        @pl.when(is_partial)
        def _acc_masked():
            row = block_start + jax.lax.broadcasted_iota(
                jnp.int32, (row_tile, 1), 0)
            valid = row < n_rows
            acc1_ref[...] += jnp.where(valid, per1, 0.0)
            acc2_ref[...] += jnp.where(valid, per2, 0.0)
    else:
        acc1_ref[...] += per1
        acc2_ref[...] += per2

    @pl.when(i == last)
    def _finalize():
        # lambda_k / numel_k applied once here -> result IS this core's partial
        # contribution to the final scalar loss.
        total = (scale1 * jnp.sum(acc1_ref[...])
                 + scale2 * jnp.sum(acc2_ref[...]))
        o_ref[...] = jnp.full(o_ref.shape, total, jnp.float32)


def ontological_loss_forward(out, targets, lambda1, lambda2, lambda3,
                             weights_1, weights_2):
    """Pallas-backed equivalent of Ontological_Loss.forward.

    out     = (embedding1, out1_1, out1_2)
    targets = (target1_1, target1_2)
    lambda3 / weights_2 / embedding1 are unused in forward (kept for API parity).
    """
    _embedding1, out1_1, out1_2 = out
    target1_1, target1_2 = targets

    B, C1 = out1_1.shape
    B2, C2 = out1_2.shape
    assert B == B2, "batch mismatch between the two heads"

    c1p = _round_up(C1, 128)                 # lane-padded width inside VMEM
    c2p = _round_up(C2, 128)

    # --- row tile: as large as the VMEM budget allows (per perf review) -----
    # per-row f32 VMEM: 2 pipeline buffers x (x,y) of both heads + 2 accs +
    # headroom for elementwise temporaries  ->  ~7 * (c1p + c2p) * 4 bytes.
    vmem_limit = 32 * 1024 * 1024            # explicit, safe on v5e/v6e/v7x
    budget = 20 * 1024 * 1024                # working-set target w/ headroom
    per_row_bytes = 28 * (c1p + c2p)
    cap = max(8, (budget // per_row_bytes) // 8 * 8)
    row_tile = int(min(2048, cap, _round_up(B, 8)))

    nb = -(-B // row_tile)                   # data row-blocks (ceil)
    bpc = -(-nb // 2)                        # row-blocks per core (2-way split)
    any_padding = (nb * row_tile != B) or (2 * bpc != nb)

    # pos_weight - 1 per lane (head 2 has pos_weight == 1 -> no coefficient)
    pwm1 = jnp.asarray(weights_1, jnp.float32).reshape(1, C1) - 1.0

    # fold lambda weighting and the "mean" into compile-time per-head scalars
    scale1 = float(lambda1) / float(B * C1)
    scale2 = float(lambda2) / float(B * C2)

    kernel = functools.partial(
        _fused_loss_kernel,
        scale1=scale1, scale2=scale2, n_rows=B, row_tile=row_tile,
        blocks_per_core=bpc, any_padding=any_padding)

    def row_block(c, i):
        # Clamp so the (at most one) fully-out-of-range block re-reads the last
        # valid block; its rows are >= n_rows and are masked in the kernel.
        return (jnp.minimum(c * bpc + i, nb - 1), 0)

    partials = pl.pallas_call(
        kernel,
        out_shape=jax.ShapeDtypeStruct((2, 8, 128), jnp.float32),
        grid_spec=pltpu.PrefetchScalarGridSpec(
            num_scalar_prefetch=0,
            grid=(2, bpc),
            in_specs=[
                pl.BlockSpec((row_tile, C1), row_block),        # out1_1
                pl.BlockSpec((row_tile, C1), row_block),        # target1_1
                pl.BlockSpec((row_tile, C2), row_block),        # out1_2
                pl.BlockSpec((row_tile, C2), row_block),        # target1_2
                pl.BlockSpec((1, C1), lambda c, i: (0, 0)),     # pos_weight-1
            ],
            out_specs=pl.BlockSpec((1, 8, 128), lambda c, i: (c, 0, 0)),
            scratch_shapes=[
                pltpu.VMEM((row_tile, C1), jnp.float32),        # head-1 acc
                pltpu.VMEM((row_tile, C2), jnp.float32),        # head-2 acc
            ],
        ),
        compiler_params=pltpu.CompilerParams(
            dimension_semantics=("parallel", "arbitrary"),
            vmem_limit_bytes=vmem_limit),
    )(out1_1, target1_1, out1_2, target1_2, pwm1)

    # Combine the two per-core partial sums; `.mean()` on a scalar = identity.
    return partials[0, 0, 0] + partials[1, 0, 0]


def _reference_jax(out, targets, lambda1, lambda2, weights_1):
    """Pure-JAX reference for correctness checking."""
    _, out1_1, out1_2 = out
    t1, t2 = targets

    def bce(x, y, pw):
        x = x.astype(jnp.float32)
        y = y.astype(jnp.float32)
        sp = jnp.maximum(-x, 0.0) + jnp.log1p(jnp.exp(-jnp.abs(x)))
        return jnp.mean((1.0 - y) * x + (1.0 + (pw - 1.0) * y) * sp)

    L1 = bce(out1_1, t1, weights_1.reshape(1, -1).astype(jnp.float32))
    L2 = bce(out1_2, t2, jnp.ones((1, out1_2.shape[-1]), jnp.float32))
    return lambda1 * L1 + lambda2 * L2


if __name__ == "__main__":
    key = jax.random.PRNGKey(0)
    k_emb, k_o1, k_o2, k_t1, k_t2, k_w1 = jax.random.split(key, 6)

    # non-aligned small shapes on purpose: exercise lane-ragged blocks,
    # partial-row masking and the 2-way core split with a clamped extra block.
    B, D_EMB, C1, C2 = 10, 32, 20, 12

    embedding1 = jax.random.normal(k_emb, (B, D_EMB), dtype=jnp.float32)
    out1_1 = jax.random.normal(k_o1, (B, C1), dtype=jnp.float32)
    out1_2 = jax.random.normal(k_o2, (B, C2), dtype=jnp.float32)

    target1_1 = (jax.random.uniform(k_t1, (B, C1)) > 0.5).astype(jnp.float32)
    target1_2 = (jax.random.uniform(k_t2, (B, C2)) > 0.5).astype(jnp.float32)

    # deterministic "parameters" of the loss module
    lambda1, lambda2, lambda3 = 1.0, 0.5, 0.25   # lambda3 unused in forward
    weights_1 = jax.random.uniform(k_w1, (C1,), minval=0.5, maxval=2.0)
    weights_2 = jnp.ones((C2,), dtype=jnp.float32)  # unused in forward

    loss = ontological_loss_forward(
        (embedding1, out1_1, out1_2),
        (target1_1, target1_2),
        lambda1, lambda2, lambda3, weights_1, weights_2,
    )
    loss = jax.block_until_ready(loss)

    ref = _reference_jax(
        (embedding1, out1_1, out1_2),
        (target1_1, target1_2),
        lambda1, lambda2, weights_1,
    )
    assert jnp.allclose(loss, ref, rtol=1e-5, atol=1e-5), (loss, ref)

    print("KERNEL_OK")
</pallas_src>

<mosaic_0001>
module attributes {stable_mosaic.version = 11 : i64} {
  func.func @_fused_loss_kernel(%arg0: i32, %arg1: i32, %arg2: memref<16x20xf32, #tpu.memory_space<vmem>>, %arg3: memref<16x20xf32, #tpu.memory_space<vmem>>, %arg4: memref<16x12xf32, #tpu.memory_space<vmem>>, %arg5: memref<16x12xf32, #tpu.memory_space<vmem>>, %arg6: memref<1x20xf32, #tpu.memory_space<vmem>>, %arg7: memref<1x8x128xf32, #tpu.memory_space<vmem>>, %arg8: memref<16x20xf32, #tpu.memory_space<vmem>>, %arg9: memref<16x12xf32, #tpu.memory_space<vmem>>) attributes {dimension_semantics = [#tpu.dimension_semantics<parallel>, #tpu.dimension_semantics<arbitrary>], iteration_bounds = array<i64: 2, 1>, scalar_prefetch = 0 : i64, scratch_operands = 2 : i64, tpu.core_type = #tpu.core_type<tc>, window_params = [{transform_indices = @transform_0, window_bounds = array<i64: 16, 20>}, {transform_indices = @transform_1, window_bounds = array<i64: 16, 20>}, {transform_indices = @transform_2, window_bounds = array<i64: 16, 12>}, {transform_indices = @transform_3, window_bounds = array<i64: 16, 12>}, {pipeline_mode = #tpu.pipeline_mode<synchronous>, transform_indices = @transform_4, window_bounds = array<i64: 1, 20>}, {transform_indices = @transform_5, window_bounds = array<i64: 1, 8, 128>}]} {
    %c0_i32 = arith.constant 0 : i32
    %0 = arith.cmpi eq, %arg1, %c0_i32 : i32
    %1 = arith.extui %0 : i1 to i32
    %c0_i32_0 = arith.constant 0 : i32
    %2 = arith.cmpi ne, %1, %c0_i32_0 : i32
    scf.if %2 {
      %cst_23 = arith.constant 0.000000e+00 : f32
      %54 = vector.broadcast %cst_23 : f32 to vector<16x20xf32>
      %c0_24 = arith.constant 0 : index
      %c0_25 = arith.constant 0 : index
      %55 = vector.load %arg8[%c0_24, %c0_25] : memref<16x20xf32, #tpu.memory_space<vmem>>, vector<16x20xf32>
      tpu.vector_store %arg8[%c0_24, %c0_25], %54 {strides = array<i32>} : memref<16x20xf32, #tpu.memory_space<vmem>>, vector<16x20xf32>,
      %cst_26 = arith.constant 0.000000e+00 : f32
      %56 = vector.broadcast %cst_26 : f32 to vector<16x12xf32>
      %c0_27 = arith.constant 0 : index
      %c0_28 = arith.constant 0 : index
      %57 = vector.load %arg9[%c0_27, %c0_28] : memref<16x12xf32, #tpu.memory_space<vmem>>, vector<16x12xf32>
      tpu.vector_store %arg9[%c0_27, %c0_28], %56 {strides = array<i32>} : memref<16x12xf32, #tpu.memory_space<vmem>>, vector<16x12xf32>,
    } else {
    }
    %c0 = arith.constant 0 : index
    %c0_1 = arith.constant 0 : index
    %3 = vector.load %arg2[%c0, %c0_1] : memref<16x20xf32, #tpu.memory_space<vmem>>, vector<16x20xf32>
    %c0_2 = arith.constant 0 : index
    %c0_3 = arith.constant 0 : index
    %4 = vector.load %arg3[%c0_2, %c0_3] : memref<16x20xf32, #tpu.memory_space<vmem>>, vector<16x20xf32>
    %c0_4 = arith.constant 0 : index
    %c0_5 = arith.constant 0 : index
    %5 = vector.load %arg4[%c0_4, %c0_5] : memref<16x12xf32, #tpu.memory_space<vmem>>, vector<16x12xf32>
    %c0_6 = arith.constant 0 : index
    %c0_7 = arith.constant 0 : index
    %6 = vector.load %arg5[%c0_6, %c0_7] : memref<16x12xf32, #tpu.memory_space<vmem>>, vector<16x12xf32>
    %c0_8 = arith.constant 0 : index
    %c0_9 = arith.constant 0 : index
    %7 = vector.load %arg6[%c0_8, %c0_9] : memref<1x20xf32, #tpu.memory_space<vmem>>, vector<1x20xf32>
    %cst = arith.constant 0.000000e+00 : f32
    %8 = vector.broadcast %cst : f32 to vector<16x20xf32>
    %9 = arith.subf %8, %3 : vector<16x20xf32>
    %cst_10 = arith.constant 0.000000e+00 : f32
    %10 = vector.broadcast %cst_10 : f32 to vector<16x20xf32>
    %11 = arith.maximumf %9, %10 : vector<16x20xf32>
    %12 = math.absf %3 : vector<16x20xf32>
    %cst_11 = arith.constant 0.000000e+00 : f32
    %13 = vector.broadcast %cst_11 : f32 to vector<16x20xf32>
    %14 = arith.subf %13, %12 : vector<16x20xf32>
    %15 = math.exp %14 : vector<16x20xf32>
    %16 = math.log1p %15 : vector<16x20xf32>
    %17 = arith.addf %11, %16 : vector<16x20xf32>
    %cst_12 = arith.constant 1.000000e+00 : f32
    %18 = vector.broadcast %cst_12 : f32 to vector<16x20xf32>
    %19 = arith.subf %18, %4 : vector<16x20xf32>
    %20 = arith.mulf %19, %3 : vector<16x20xf32>
    %21 = vector.broadcast %7 : vector<1x20xf32> to vector<16x20xf32>
    %22 = arith.mulf %21, %4 : vector<16x20xf32>
    %cst_13 = arith.constant 1.000000e+00 : f32
    %23 = vector.broadcast %cst_13 : f32 to vector<16x20xf32>
    %24 = arith.addf %23, %22 : vector<16x20xf32>
    %25 = arith.mulf %24, %17 : vector<16x20xf32>
    %26 = arith.addf %20, %25 : vector<16x20xf32>
    %cst_14 = arith.constant 0.000000e+00 : f32
    %27 = vector.broadcast %cst_14 : f32 to vector<16x12xf32>
    %28 = arith.subf %27, %5 : vector<16x12xf32>
    %cst_15 = arith.constant 0.000000e+00 : f32
    %29 = vector.broadcast %cst_15 : f32 to vector<16x12xf32>
    %30 = arith.maximumf %28, %29 : vector<16x12xf32>
    %31 = math.absf %5 : vector<16x12xf32>
    %cst_16 = arith.constant 0.000000e+00 : f32
    %32 = vector.broadcast %cst_16 : f32 to vector<16x12xf32>
    %33 = arith.subf %32, %31 : vector<16x12xf32>
    %34 = math.exp %33 : vector<16x12xf32>
    %35 = math.log1p %34 : vector<16x12xf32>
    %36 = arith.addf %30, %35 : vector<16x12xf32>
    %cst_17 = arith.constant 1.000000e+00 : f32
    %37 = vector.broadcast %cst_17 : f32 to vector<16x12xf32>
    %38 = arith.subf %37, %6 : vector<16x12xf32>
    %39 = arith.mulf %38, %5 : vector<16x12xf32>
    %40 = arith.addf %39, %36 : vector<16x12xf32>
    %c1_i32 = arith.constant 1 : i32
    %41 = arith.muli %arg0, %c1_i32 : i32
    %42 = arith.addi %41, %arg1 : i32
    %c16_i32 = arith.constant 16 : i32
    %43 = arith.muli %42, %c16_i32 : i32
    %c16_i32_18 = arith.constant 16 : i32
    %44 = arith.addi %43, %c16_i32_18 : i32
    %c10_i32 = arith.constant 10 : i32
    %45 = arith.cmpi sgt, %44, %c10_i32 : i32
    %true = arith.constant true
    %46 = arith.xori %45, %true : i1
    %47 = arith.extui %46 : i1 to i32
    %c0_i32_19 = arith.constant 0 : i32
    %48 = arith.cmpi ne, %47, %c0_i32_19 : i32
    scf.if %48 {
      %c0_23 = arith.constant 0 : index
      %c0_24 = arith.constant 0 : index
      %54 = vector.load %arg8[%c0_23, %c0_24] : memref<16x20xf32, #tpu.memory_space<vmem>>, vector<16x20xf32>
      %55 = arith.addf %54, %26 : vector<16x20xf32>
      %c0_25 = arith.constant 0 : index
      %c0_26 = arith.constant 0 : index
      %56 = vector.load %arg8[%c0_25, %c0_26] : memref<16x20xf32, #tpu.memory_space<vmem>>, vector<16x20xf32>
      tpu.vector_store %arg8[%c0_25, %c0_26], %55 {strides = array<i32>} : memref<16x20xf32, #tpu.memory_space<vmem>>, vector<16x20xf32>,
      %c0_27 = arith.constant 0 : index
      %c0_28 = arith.constant 0 : index
      %57 = vector.load %arg9[%c0_27, %c0_28] : memref<16x12xf32, #tpu.memory_space<vmem>>, vector<16x12xf32>
      %58 = arith.addf %57, %40 : vector<16x12xf32>
      %c0_29 = arith.constant 0 : index
      %c0_30 = arith.constant 0 : index
      %59 = vector.load %arg9[%c0_29, %c0_30] : memref<16x12xf32, #tpu.memory_space<vmem>>, vector<16x12xf32>
      tpu.vector_store %arg9[%c0_29, %c0_30], %58 {strides = array<i32>} : memref<16x12xf32, #tpu.memory_space<vmem>>, vector<16x12xf32>,
    } else {
    }
    %49 = arith.extui %45 : i1 to i32
    %c0_i32_20 = arith.constant 0 : i32
    %50 = arith.cmpi ne, %49, %c0_i32_20 : i32
    scf.if %50 {
      %54 = tpu.iota {dimensions = array<i32: 0>} : vector<16x1xi32>
      %55 = vector.broadcast %43 : i32 to vector<16x1xi32>
      %56 = arith.addi %55, %54 : vector<16x1xi32>
      %c10_i32_23 = arith.constant 10 : i32
      %57 = vector.broadcast %c10_i32_23 : i32 to vector<16x1xi32>
      %58 = arith.cmpi slt, %56, %57 : vector<16x1xi32>
      %c0_24 = arith.constant 0 : index
      %c0_25 = arith.constant 0 : index
      %59 = vector.load %arg8[%c0_24, %c0_25] : memref<16x20xf32, #tpu.memory_space<vmem>>, vector<16x20xf32>
      %cst_26 = arith.constant 0.000000e+00 : f32
      %60 = vector.shape_cast %58 : vector<16x1xi1> to vector<16x1xi1>
      %61 = vector.broadcast %60 : vector<16x1xi1> to vector<16x20xi1>
      %62 = vector.broadcast %cst_26 : f32 to vector<16x20xf32>
      %63 = arith.select %61, %26, %62 : vector<16x20xi1>, vector<16x20xf32>
      %64 = arith.addf %59, %63 : vector<16x20xf32>
      %c0_27 = arith.constant 0 : index
      %c0_28 = arith.constant 0 : index
      %65 = vector.load %arg8[%c0_27, %c0_28] : memref<16x20xf32, #tpu.memory_space<vmem>>, vector<16x20xf32>
      tpu.vector_store %arg8[%c0_27, %c0_28], %64 {strides = array<i32>} : memref<16x20xf32, #tpu.memory_space<vmem>>, vector<16x20xf32>,
      %c0_29 = arith.constant 0 : index
      %c0_30 = arith.constant 0 : index
      %66 = vector.load %arg9[%c0_29, %c0_30] : memref<16x12xf32, #tpu.memory_space<vmem>>, vector<16x12xf32>
      %cst_31 = arith.constant 0.000000e+00 : f32
      %67 = vector.shape_cast %58 : vector<16x1xi1> to vector<16x1xi1>
      %68 = vector.broadcast %67 : vector<16x1xi1> to vector<16x12xi1>
      %69 = vector.broadcast %cst_31 : f32 to vector<16x12xf32>
      %70 = arith.select %68, %40, %69 : vector<16x12xi1>, vector<16x12xf32>
      %71 = arith.addf %66, %70 : vector<16x12xf32>
      %c0_32 = arith.constant 0 : index
      %c0_33 = arith.constant 0 : index
      %72 = vector.load %arg9[%c0_32, %c0_33] : memref<16x12xf32, #tpu.memory_space<vmem>>, vector<16x12xf32>
      tpu.vector_store %arg9[%c0_32, %c0_33], %71 {strides = array<i32>} : memref<16x12xf32, #tpu.memory_space<vmem>>, vector<16x12xf32>,
    } else {
    }
    %c0_i32_21 = arith.constant 0 : i32
    %51 = arith.cmpi eq, %arg1, %c0_i32_21 : i32
    %52 = arith.extui %51 : i1 to i32
    %c0_i32_22 = arith.constant 0 : i32
    %53 = arith.cmpi ne, %52, %c0_i32_22 : i32
    scf.if %53 {
      %c0_23 = arith.constant 0 : index
      %c0_24 = arith.constant 0 : index
      %54 = vector.load %arg8[%c0_23, %c0_24] : memref<16x20xf32, #tpu.memory_space<vmem>>, vector<16x20xf32>
      %55 = vector.shape_cast %54 : vector<16x20xf32> to vector<1x16x20xf32>
      %cst_25 = arith.constant dense<0.000000e+00> : vector<1xf32>
      %56 = vector.multi_reduction <add>, %55, %cst_25 [1, 2] : vector<1x16x20xf32> to vector<1xf32>
      %57 = vector.shape_cast %56 : vector<1xf32> to vector<1x1x1xf32>
      %58 = vector.extract %57[0, 0, 0] : f32 from vector<1x1x1xf32>
      %cst_26 = arith.constant 5.000000e-03 : f32
      %59 = arith.mulf %cst_26, %58 : f32
      %c0_27 = arith.constant 0 : index
      %c0_28 = arith.constant 0 : index
      %60 = vector.load %arg9[%c0_27, %c0_28] : memref<16x12xf32, #tpu.memory_space<vmem>>, vector<16x12xf32>
      %61 = vector.shape_cast %60 : vector<16x12xf32> to vector<1x16x12xf32>
      %cst_29 = arith.constant dense<0.000000e+00> : vector<1xf32>
      %62 = vector.multi_reduction <add>, %61, %cst_29 [1, 2] : vector<1x16x12xf32> to vector<1xf32>
      %63 = vector.shape_cast %62 : vector<1xf32> to vector<1x1x1xf32>
      %64 = vector.extract %63[0, 0, 0] : f32 from vector<1x1x1xf32>
      %cst_30 = arith.constant 0.00416666688 : f32
      %65 = arith.mulf %cst_30, %64 : f32
      %66 = arith.addf %59, %65 : f32
      %67 = vector.broadcast %66 : f32 to vector<1x8x128xf32>
      %c0_31 = arith.constant 0 : index
      %c0_32 = arith.constant 0 : index
      %c0_33 = arith.constant 0 : index
      %68 = vector.load %arg7[%c0_31, %c0_32, %c0_33] : memref<1x8x128xf32, #tpu.memory_space<vmem>>, vector<1x8x128xf32>
      tpu.vector_store %arg7[%c0_31, %c0_32, %c0_33], %67 {strides = array<i32>} : memref<1x8x128xf32, #tpu.memory_space<vmem>>, vector<1x8x128xf32>,
    } else {
    }
    return
  }
  func.func @transform_0(%arg0: i32, %arg1: i32) -> (i32, i32) {
    %c1_i32 = arith.constant 1 : i32
    %0 = arith.muli %arg0, %c1_i32 : i32
    %1 = arith.addi %0, %arg1 : i32
    %c0_i32 = arith.constant 0 : i32
    %2 = arith.minsi %1, %c0_i32 : i32
    %c0_i32_0 = arith.constant 0 : i32
    %c0_i32_1 = arith.constant 0 : i32
    return %2, %c0_i32_0 : i32, i32
  }
  func.func @transform_1(%arg0: i32, %arg1: i32) -> (i32, i32) {
    %c1_i32 = arith.constant 1 : i32
    %0 = arith.muli %arg0, %c1_i32 : i32
    %1 = arith.addi %0, %arg1 : i32
    %c0_i32 = arith.constant 0 : i32
    %2 = arith.minsi %1, %c0_i32 : i32
    %c0_i32_0 = arith.constant 0 : i32
    %c0_i32_1 = arith.constant 0 : i32
    return %2, %c0_i32_0 : i32, i32
  }
  func.func @transform_2(%arg0: i32, %arg1: i32) -> (i32, i32) {
    %c1_i32 = arith.constant 1 : i32
    %0 = arith.muli %arg0, %c1_i32 : i32
    %1 = arith.addi %0, %arg1 : i32
    %c0_i32 = arith.constant 0 : i32
    %2 = arith.minsi %1, %c0_i32 : i32
    %c0_i32_0 = arith.constant 0 : i32
    %c0_i32_1 = arith.constant 0 : i32
    return %2, %c0_i32_0 : i32, i32
  }
  func.func @transform_3(%arg0: i32, %arg1: i32) -> (i32, i32) {
    %c1_i32 = arith.constant 1 : i32
    %0 = arith.muli %arg0, %c1_i32 : i32
    %1 = arith.addi %0, %arg1 : i32
    %c0_i32 = arith.constant 0 : i32
    %2 = arith.minsi %1, %c0_i32 : i32
    %c0_i32_0 = arith.constant 0 : i32
    %c0_i32_1 = arith.constant 0 : i32
    return %2, %c0_i32_0 : i32, i32
  }
  func.func @transform_4(%arg0: i32, %arg1: i32) -> (i32, i32) {
    %c0_i32 = arith.constant 0 : i32
    %c0_i32_0 = arith.constant 0 : i32
    %c0_i32_1 = arith.constant 0 : i32
    return %c0_i32, %c0_i32_0 : i32, i32
  }
  func.func @transform_5(%arg0: i32, %arg1: i32) -> (i32, i32, i32) {
    %c0_i32 = arith.constant 0 : i32
    %c0_i32_0 = arith.constant 0 : i32
    %c0_i32_1 = arith.constant 0 : i32
    return %arg0, %c0_i32, %c0_i32_0 : i32, i32, i32
  }
}

</mosaic_0001>

<llo_original>
// kernel: tpu_custom_call.1
$region0: #{tpu_custom_call.1}
  #allocation0 [shape = 'u32[]', space=smem, size = 0x4, offset = 0x4, fixed_abs, tag = 'smem constant byte address 0x4 - core index']
  #allocation1 [shape = 'u32[144,128]{1,0:T(1,128)}', space=vmem, size = 0x12000, scoped, tag = 'internal scratch']
  #allocation2 [shape = 'f32[16,20]{1,0:T(8,128)}', space=vmem, size = 0x2000, scoped, tag = 'scratch operand']
  #allocation3 [shape = 'f32[16,12]{1,0:T(8,128)}', space=vmem, size = 0x2000, scoped, tag = 'scratch operand']
  %s0 = inlined_call_operand.hbm [shape: f32[10,20], index: 0, kind: input, shape index: {}]
  %s1 = inlined_call_operand.hbm [shape: f32[10,20], index: 1, kind: input, shape index: {}]
  %s2 = inlined_call_operand.hbm [shape: f32[10,12], index: 2, kind: input, shape index: {}]
  %s3 = inlined_call_operand.hbm [shape: f32[10,12], index: 3, kind: input, shape index: {}]
  %s4 = inlined_call_operand.vmem [shape: f32[1,20], index: 4, kind: input, shape index: {}]
  %s5 = inlined_call_operand.hbm [shape: f32[2,8,128], index: 5, kind: output, shape index: {}]
  %s6 = sld [smem:[#allocation0]]
  $region85: #{tpu_custom_call.1} parent=0
    _
  %s8 = ssub.s32 1, %s6
  %s9 = scalar_select 0, %s8, %s6
  $region1: #{tpu_custom_call.1} parent=0
    #allocation4 [shape = 'u8[16384]{0}', space=vmem, size = 0x4000, scoped, tag = 'input window, operand 0']
    #allocation5 [shape = 's32[2]{0}', space=sflag, size = 0x8, scoped, tag = 'scoped memory for tpu_custom_call.1']
    #allocation6 [shape = 's32[2]{0}', space=sflag, size = 0x8, scoped, tag = 'scoped memory for tpu_custom_call.1']
    #allocation7 [shape = 'u8[16384]{0}', space=vmem, size = 0x4000, scoped, tag = 'input window, operand 1']
    #allocation8 [shape = 's32[2]{0}', space=sflag, size = 0x8, scoped, tag = 'scoped memory for tpu_custom_call.1']
    #allocation9 [shape = 'u8[16384]{0}', space=vmem, size = 0x4000, scoped, tag = 'input window, operand 2']
    #allocation10 [shape = 'u8[16384]{0}', space=vmem, size = 0x4000, scoped, tag = 'input window, operand 3']
    #allocation11 [shape = 's32[2]{0}', space=sflag, size = 0x8, scoped, tag = 'scoped memory for tpu_custom_call.1']
    #allocation12 [shape = 'u8[8192]{0}', space=vmem, size = 0x2000, scoped, tag = 'output window, operand 0']
    %10 = vsyncpa [#allocation5], 0
    %s11 = scalar_lea.sflag [#allocation5], 1
    %12 = vsyncpa %s11, 0
    %13 = vsyncpa [#allocation8], 0
    %s14 = scalar_lea.sflag [#allocation8], 1
    %15 = vsyncpa %s14, 0
    %16 = vsyncpa [#allocation11], 0
    %s17 = scalar_lea.sflag [#allocation11], 1
    %18 = vsyncpa %s17, 0
    %19 = vsyncpa [#allocation6], 0
    %s20 = scalar_lea.sflag [#allocation6], 1
    %21 = vsyncpa %s20, 0
    loop: start=0, step=1, limit=4
    $region2: #{tpu_custom_call.1} parent=1 // loop_pre_header
      _
    $region3: #{tpu_custom_call.1} parent=1 // loop_header
      %s23 = sphi 0, %s27
      %p24 = scmp.ge.s32.totalorder %s23, 4
      %s30 = sphi 0, %s42
      %s31 = sphi 0, %s38
      %s32 = sphi 0, %s30
      %s33 = sphi 0, %s31
      %s34 = sphi 0, %s32
      %s35 = sphi 0, %s33
      %s51 = sphi 0, %s53
      %s54 = sphi 0, %s51
      %s55 = sphi 0, %s54
      %s71 = sphi 0, %s55
      %s83 = sphi 0, %s85
      %s86 = sphi 0, %s83
      %s87 = sphi 0, %s86
      %s103 = sphi 0, %s87
      %s115 = sphi 0, %s117
      %s118 = sphi 0, %s115
      %s119 = sphi 0, %s118
      %s135 = sphi 0, %s119
      %s147 = sphi 0, %s149
      %s150 = sphi 0, %s147
      %s151 = sphi 0, %s150
      %s167 = sphi 0, %s151
      %s171 = sphi 0, %s171
      %s173 = sphi 0, %s171
      %s174 = sphi 0, %s173
      %s188 = sphi 0, %s174
      %s194 = sphi 0, %s196
      %s197 = sphi 0, %s194
      %s198 = sphi 0, %s197
      %s214 = sphi 0, %s198
    $region4: #{tpu_custom_call.1} parent=1 // loop_header_branch
      %26 = sbr.rel (%p24) target = $region8
    $region5: #{tpu_custom_call.1} parent=1 // loop_body
      %s28 = ssub.s32 %s23, 1
      %s29 = ssub.s32 %s23, 2
      %s36 = sadd.s32 1, %s31
      %p37 = scmp.ge.s32.totalorder %s36, 1
      %s38 = scalar_select %p37, 0, %s36
      %s39 = sadd.s32 1, %s30
      %s40 = scalar_select %p37, %s39, %s30
      %p41 = scmp.ge.s32.totalorder %s40, 2
      %s42 = scalar_select %p41, 0, %s40
      %s43 = sadd.s32 %s30, %s31
      %p44 = scmp.lt.s32.totalorder %s43, 0
      %s45 = scalar_select %p44, %s43, 0
      %s46 = sadd.s32 %s42, %s38
      %p47 = scmp.lt.s32.totalorder %s46, 0
      %s48 = scalar_select %p47, %s46, 0
      %s49 = ssub.s32 %s45, %s48
      %p50 = scmp.eq.s32.totalorder %s49, 0
      %s52 = sadd.s32 %s51, 1
      %s53 = scalar_select %p50, %s51, %s52
      %p56 = pneg %p50
      %p57 = scmp.eq.s32.totalorder %s23, 1
      %p58 = por %p56, %p57
      %p59 = scmp.ne.s32.totalorder %s51, %s54
      %p60 = scmp.eq.s32.totalorder %s23, 0
      %p61 = por %p59, %p60
      %p62 = scmp.ne.s32.totalorder %s51, %s54
      %p63 = scmp.eq.s32.totalorder %s28, 1
      %p64 = por %p62, %p63
      %p65 = scmp.ne.s32.totalorder %s54, %s55
      %p66 = scmp.eq.s32.totalorder %s28, 0
      %p67 = por %p65, %p66
      %p68 = scmp.ne.s32.totalorder %s54, %s55
      %p69 = scmp.eq.s32.totalorder %s29, 1
      %p70 = por %p68, %p69
      %p72 = scmp.ne.s32.totalorder %s55, %s71
      %p73 = scmp.eq.s32.totalorder %s29, 0
      %p74 = por %p72, %p73
      %s75 = sadd.s32 %s30, %s31
      %p76 = scmp.lt.s32.totalorder %s75, 0
      %s77 = scalar_select %p76, %s75, 0
      %s78 = sadd.s32 %s42, %s38
      %p79 = scmp.lt.s32.totalorder %s78, 0
      %s80 = scalar_select %p79, %s78, 0
      %s81 = ssub.s32 %s77, %s80
      %p82 = scmp.eq.s32.totalorder %s81, 0
      %s84 = sadd.s32 %s83, 1
      %s85 = scalar_select %p82, %s83, %s84
      %p88 = pneg %p82
      %p89 = scmp.eq.s32.totalorder %s23, 1
      %p90 = por %p88, %p89
      %p91 = scmp.ne.s32.totalorder %s83, %s86
      %p92 = scmp.eq.s32.totalorder %s23, 0
      %p93 = por %p91, %p92
      %p94 = scmp.ne.s32.totalorder %s83, %s86
      %p95 = scmp.eq.s32.totalorder %s28, 1
      %p96 = por %p94, %p95
      %p97 = scmp.ne.s32.totalorder %s86, %s87
      %p98 = scmp.eq.s32.totalorder %s28, 0
      %p99 = por %p97, %p98
      %p100 = scmp.ne.s32.totalorder %s86, %s87
      %p101 = scmp.eq.s32.totalorder %s29, 1
      %p102 = por %p100, %p101
      %p104 = scmp.ne.s32.totalorder %s87, %s103
      %p105 = scmp.eq.s32.totalorder %s29, 0
      %p106 = por %p104, %p105
      %s107 = sadd.s32 %s30, %s31
      %p108 = scmp.lt.s32.totalorder %s107, 0
      %s109 = scalar_select %p108, %s107, 0
      %s110 = sadd.s32 %s42, %s38
      %p111 = scmp.lt.s32.totalorder %s110, 0
      %s112 = scalar_select %p111, %s110, 0
      %s113 = ssub.s32 %s109, %s112
      %p114 = scmp.eq.s32.totalorder %s113, 0
      %s116 = sadd.s32 %s115, 1
      %s117 = scalar_select %p114, %s115, %s116
      %p120 = pneg %p114
      %p121 = scmp.eq.s32.totalorder %s23, 1
      %p122 = por %p120, %p121
      %p123 = scmp.ne.s32.totalorder %s115, %s118
      %p124 = scmp.eq.s32.totalorder %s23, 0
      %p125 = por %p123, %p124
      %p126 = scmp.ne.s32.totalorder %s115, %s118
      %p127 = scmp.eq.s32.totalorder %s28, 1
      %p128 = por %p126, %p127
      %p129 = scmp.ne.s32.totalorder %s118, %s119
      %p130 = scmp.eq.s32.totalorder %s28, 0
      %p131 = por %p129, %p130
      %p132 = scmp.ne.s32.totalorder %s118, %s119
      %p133 = scmp.eq.s32.totalorder %s29, 1
      %p134 = por %p132, %p133
      %p136 = scmp.ne.s32.totalorder %s119, %s135
      %p137 = scmp.eq.s32.totalorder %s29, 0
      %p138 = por %p136, %p137
      %s139 = sadd.s32 %s30, %s31
      %p140 = scmp.lt.s32.totalorder %s139, 0
      %s141 = scalar_select %p140, %s139, 0
      %s142 = sadd.s32 %s42, %s38
      %p143 = scmp.lt.s32.totalorder %s142, 0
      %s144 = scalar_select %p143, %s142, 0
      %s145 = ssub.s32 %s141, %s144
      %p146 = scmp.eq.s32.totalorder %s145, 0
      %s148 = sadd.s32 %s147, 1
      %s149 = scalar_select %p146, %s147, %s148
      %p152 = pneg %p146
      %p153 = scmp.eq.s32.totalorder %s23, 1
      %p154 = por %p152, %p153
      %p155 = scmp.ne.s32.totalorder %s147, %s150
      %p156 = scmp.eq.s32.totalorder %s23, 0
      %p157 = por %p155, %p156
      %p158 = scmp.ne.s32.totalorder %s147, %s150
      %p159 = scmp.eq.s32.totalorder %s28, 1
      %p160 = por %p158, %p159
      %p161 = scmp.ne.s32.totalorder %s150, %s151
      %p162 = scmp.eq.s32.totalorder %s28, 0
      %p163 = por %p161, %p162
      %p164 = scmp.ne.s32.totalorder %s150, %s151
      %p165 = scmp.eq.s32.totalorder %s29, 1
      %p166 = por %p164, %p165
      %p168 = scmp.ne.s32.totalorder %s151, %s167
      %p169 = scmp.eq.s32.totalorder %s29, 0
      %p170 = por %p168, %p169
      %s172 = sadd.s32 %s171, 1
      %p175 = scmp.eq.s32.totalorder %s23, 1
      %p176 = scmp.ne.s32.totalorder %s171, %s173
      %p177 = scmp.eq.s32.totalorder %s23, 0
      %p178 = por %p176, %p177
      %p179 = scmp.ne.s32.totalorder %s171, %s173
      %p180 = scmp.eq.s32.totalorder %s28, 1
      %p181 = por %p179, %p180
      %p182 = scmp.ne.s32.totalorder %s173, %s174
      %p183 = scmp.eq.s32.totalorder %s28, 0
      %p184 = por %p182, %p183
      %p185 = scmp.ne.s32.totalorder %s173, %s174
      %p186 = scmp.eq.s32.totalorder %s29, 1
      %p187 = por %p185, %p186
      %p189 = scmp.ne.s32.totalorder %s174, %s188
      %p190 = scmp.eq.s32.totalorder %s29, 0
      %p191 = por %p189, %p190
      %s192 = ssub.s32 %s30, %s42
      %p193 = scmp.eq.s32.totalorder %s192, 0
      %s195 = sadd.s32 %s194, 1
      %s196 = scalar_select %p193, %s194, %s195
      %p199 = pneg %p193
      %p200 = scmp.eq.s32.totalorder %s23, 1
      %p201 = por %p199, %p200
      %p202 = scmp.ne.s32.totalorder %s194, %s197
      %p203 = scmp.eq.s32.totalorder %s23, 0
      %p204 = por %p202, %p203
      %p205 = scmp.ne.s32.totalorder %s194, %s197
      %p206 = scmp.eq.s32.totalorder %s28, 1
      %p207 = por %p205, %p206
      %p208 = scmp.ne.s32.totalorder %s197, %s198
      %p209 = scmp.eq.s32.totalorder %s28, 0
      %p210 = por %p208, %p209
      %p211 = scmp.ne.s32.totalorder %s197, %s198
      %p212 = scmp.eq.s32.totalorder %s29, 1
      %p213 = por %p211, %p212
      %p215 = scmp.ne.s32.totalorder %s198, %s214
      %p216 = scmp.eq.s32.totalorder %s29, 0
      %p217 = por %p215, %p216
      %p218 = scmp.le.s32.totalorder 1, %s23
      %p219 = scmp.lt.s32.totalorder %s23, 3
      %p220 = pnand %p218, %p219
      %p221 = pneg %p220
      // Predicated region
      $region9: #{tpu_custom_call.1} parent=5 // pred_check
        _
      $region10: #{tpu_custom_call.1} parent=5 // pred_check_branch
        %223 = sbr.rel (%p220) target = $region12
      $region11: #{tpu_custom_call.1} parent=5 // pred_region
        %s224 = ssub.s32 %s23, 1
        // Predicated region
        $region13: #{tpu_custom_call.1} parent=11 // pred_check
          %p225 = pneg %p184
        $region14: #{tpu_custom_call.1} parent=11 // pred_check_branch
          %227 = sbr.rel (%p225) target = $region16
        $region15: #{tpu_custom_call.1} parent=11 // pred_region
          _
        $region16: #{tpu_custom_call.1} parent=11 // pred_fallthru
          _
      $region12: #{tpu_custom_call.1} parent=5 // pred_fallthru
        _
      %p228 = scmp.lt.s32.totalorder %s23, 2
      // Predicated region
      $region17: #{tpu_custom_call.1} parent=5 // pred_check
        %p229 = pneg %p228
      $region18: #{tpu_custom_call.1} parent=5 // pred_check_branch
        %231 = sbr.rel (%p229) target = $region20
      $region19: #{tpu_custom_call.1} parent=5 // pred_region
        // Predicated region
        $region21: #{tpu_custom_call.1} parent=19 // pred_check
          %p232 = pneg %p61
        $region22: #{tpu_custom_call.1} parent=19 // pred_check_branch
          %234 = sbr.rel (%p232) target = $region24
        $region23: #{tpu_custom_call.1} parent=19 // pred_region
          %s235 = sand.u32 %s51, 1
          %s236 = scalar_lea.sflag [#allocation5], %s235
          %s237 = sand.u32 %s51, 1
          %s238 = smul.addr %s237, 16
          %s239 = scalar_lea.vmem [#allocation4], %s238
          %s240 = sadd.s32 %s30, %s31
          %p241 = scmp.lt.s32.totalorder %s240, 0
          %s242 = scalar_select %p241, %s240, 0
          %s243 = smul.u32 2, %s242
          %s245 = ssub.s32 256, 256
          %246 = vsyncadd %s236, %s245
          %s247 = smul.addr %s243, 128
          %s248 = scalar_lea.hbm %s0, %s247
          %s249 = sshll.u32 %s239, 4
          %s250 = int_to_ptr.vmem [resolvable:$true] %s249
          %255 = dma.hbm_to_vmem [thread:$0]  %s248, 256, %s250, %s236, 128, 128, 8
        $region24: #{tpu_custom_call.1} parent=19 // pred_fallthru
          _
        // Predicated region
        $region25: #{tpu_custom_call.1} parent=19 // pred_check
          %p256 = pneg %p93
        $region26: #{tpu_custom_call.1} parent=19 // pred_check_branch
          %258 = sbr.rel (%p256) target = $region28
        $region27: #{tpu_custom_call.1} parent=19 // pred_region
          %s259 = sand.u32 %s23, 1
          %s260 = scalar_lea.sflag [#allocation8], %s259
          %s261 = sand.u32 %s83, 1
          %s262 = smul.addr %s261, 16
          %s263 = scalar_lea.vmem [#allocation7], %s262
          %s264 = sadd.s32 %s30, %s31
          %p265 = scmp.lt.s32.totalorder %s264, 0
          %s266 = scalar_select %p265, %s264, 0
          %s267 = smul.u32 2, %s266
          %s269 = ssub.s32 256, 256
          %270 = vsyncadd %s260, %s269
          %s271 = smul.addr %s267, 128
          %s272 = scalar_lea.hbm %s1, %s271
          %s273 = sshll.u32 %s263, 4
          %s274 = int_to_ptr.vmem [resolvable:$true] %s273
          %279 = dma.hbm_to_vmem [thread:$0]  %s272, 256, %s274, %s260, 128, 128, 8
        $region28: #{tpu_custom_call.1} parent=19 // pred_fallthru
          _
        // Predicated region
        $region29: #{tpu_custom_call.1} parent=19 // pred_check
          %p280 = pneg %p125
        $region30: #{tpu_custom_call.1} parent=19 // pred_check_branch
          %282 = sbr.rel (%p280) target = $region32
        $region31: #{tpu_custom_call.1} parent=19 // pred_region
          %s283 = sand.u32 %s23, 1
          %s284 = scalar_lea.sflag [#allocation8], %s283
          %s285 = sand.u32 %s115, 1
          %s286 = smul.addr %s285, 16
          %s287 = scalar_lea.vmem [#allocation9], %s286
          %s288 = sadd.s32 %s30, %s31
          %p289 = scmp.lt.s32.totalorder %s288, 0
          %s290 = scalar_select %p289, %s288, 0
          %s291 = smul.u32 2, %s290
          %s293 = ssub.s32 256, 256
          %294 = vsyncadd %s284, %s293
          %s295 = smul.addr %s291, 128
          %s296 = scalar_lea.hbm %s2, %s295
          %s297 = sshll.u32 %s287, 4
          %s298 = int_to_ptr.vmem [resolvable:$true] %s297
          %303 = dma.hbm_to_vmem [thread:$0]  %s296, 256, %s298, %s284, 128, 128, 8
        $region32: #{tpu_custom_call.1} parent=19 // pred_fallthru
          _
        // Predicated region
        $region33: #{tpu_custom_call.1} parent=19 // pred_check
          %p304 = pneg %p157
        $region34: #{tpu_custom_call.1} parent=19 // pred_check_branch
          %306 = sbr.rel (%p304) target = $region36
        $region35: #{tpu_custom_call.1} parent=19 // pred_region
          %s307 = sand.u32 %s147, 1
          %s308 = scalar_lea.sflag [#allocation11], %s307
          %s309 = sand.u32 %s147, 1
          %s310 = smul.addr %s309, 16
          %s311 = scalar_lea.vmem [#allocation10], %s310
          %s312 = sadd.s32 %s30, %s31
          %p313 = scmp.lt.s32.totalorder %s312, 0
          %s314 = scalar_select %p313, %s312, 0
          %s315 = smul.u32 2, %s314
          %s317 = ssub.s32 256, 256
          %318 = vsyncadd %s308, %s317
          %s319 = smul.addr %s315, 128
          %s320 = scalar_lea.hbm %s3, %s319
          %s321 = sshll.u32 %s311, 4
          %s322 = int_to_ptr.vmem [resolvable:$true] %s321
          %327 = dma.hbm_to_vmem [thread:$0]  %s320, 256, %s322, %s308, 128, 128, 8
        $region36: #{tpu_custom_call.1} parent=19 // pred_fallthru
          _
      $region20: #{tpu_custom_call.1} parent=5 // pred_fallthru
        _
      %p328 = scmp.le.s32.totalorder 1, %s23
      %p329 = scmp.lt.s32.totalorder %s23, 3
      %p330 = pnand %p328, %p329
      %p331 = pneg %p330
      // Predicated region
      $region37: #{tpu_custom_call.1} parent=5 // pred_check
        _
      $region38: #{tpu_custom_call.1} parent=5 // pred_check_branch
        %333 = sbr.rel (%p330) target = $region40
      $region39: #{tpu_custom_call.1} parent=5 // pred_region
        %s334 = ssub.s32 %s23, 1
        %s335 = sand.u32 %s54, 1
        %s336 = scalar_lea.sflag [#allocation5], %s335
        %s337 = sand.u32 %s54, 1
        %s338 = smul.addr %s337, 16
        %s339 = scalar_lea.vmem [#allocation4], %s338
        // Predicated region
        $region41: #{tpu_custom_call.1} parent=39 // pred_check
          %p340 = pneg %p67
        $region42: #{tpu_custom_call.1} parent=39 // pred_check_branch
          %342 = sbr.rel (%p340) target = $region44
        $region43: #{tpu_custom_call.1} parent=39 // pred_region
          %343 = dma.done %s336, 256
        $region44: #{tpu_custom_call.1} parent=39 // pred_fallthru
          _
        %s344 = sand.u32 %s28, 1
        %s345 = scalar_lea.sflag [#allocation8], %s344
        %s346 = sand.u32 %s86, 1
        %s347 = smul.addr %s346, 16
        %s348 = scalar_lea.vmem [#allocation7], %s347
        // Predicated region
        $region45: #{tpu_custom_call.1} parent=39 // pred_check
          %p349 = pneg %p99
        $region46: #{tpu_custom_call.1} parent=39 // pred_check_branch
          %351 = sbr.rel (%p349) target = $region48
        $region47: #{tpu_custom_call.1} parent=39 // pred_region
          %352 = dma.done %s345, 256
        $region48: #{tpu_custom_call.1} parent=39 // pred_fallthru
          _
        %s353 = sand.u32 %s28, 1
        %s354 = scalar_lea.sflag [#allocation8], %s353
        %s355 = sand.u32 %s118, 1
        %s356 = smul.addr %s355, 16
        %s357 = scalar_lea.vmem [#allocation9], %s356
        // Predicated region
        $region49: #{tpu_custom_call.1} parent=39 // pred_check
          %p358 = pneg %p131
        $region50: #{tpu_custom_call.1} parent=39 // pred_check_branch
          %360 = sbr.rel (%p358) target = $region52
        $region51: #{tpu_custom_call.1} parent=39 // pred_region
          %361 = dma.done %s354, 256
        $region52: #{tpu_custom_call.1} parent=39 // pred_fallthru
          _
        %s362 = sand.u32 %s150, 1
        %s363 = scalar_lea.sflag [#allocation11], %s362
        %s364 = sand.u32 %s150, 1
        %s365 = smul.addr %s364, 16
        %s366 = scalar_lea.vmem [#allocation10], %s365
        // Predicated region
        $region53: #{tpu_custom_call.1} parent=39 // pred_check
          %p367 = pneg %p163
        $region54: #{tpu_custom_call.1} parent=39 // pred_check_branch
          %369 = sbr.rel (%p367) target = $region56
        $region55: #{tpu_custom_call.1} parent=39 // pred_region
          %370 = dma.done %s363, 256
        $region56: #{tpu_custom_call.1} parent=39 // pred_fallthru
          _
        %s371 = sand.u32 %s54, 1
        %s372 = scalar_lea.sflag [#allocation5], %s371
        %s373 = sand.u32 %s54, 1
        %s374 = smul.addr %s373, 16
        %s375 = scalar_lea.vmem [#allocation4], %s374
        %p376 = pneg %p67
        %p377 = pneg %p64
        %s378 = sand.u32 %s28, 1
        %s379 = scalar_lea.sflag [#allocation8], %s378
        %s380 = sand.u32 %s86, 1
        %s381 = smul.addr %s380, 16
        %s382 = scalar_lea.vmem [#allocation7], %s381
        %p383 = pneg %p99
        %p384 = pneg %p96
        %s385 = sand.u32 %s28, 1
        %s386 = scalar_lea.sflag [#allocation8], %s385
        %s387 = sand.u32 %s118, 1
        %s388 = smul.addr %s387, 16
        %s389 = scalar_lea.vmem [#allocation9], %s388
        %p390 = pneg %p131
        %p391 = pneg %p128
        %s392 = sand.u32 %s150, 1
        %s393 = scalar_lea.sflag [#allocation11], %s392
        %s394 = sand.u32 %s150, 1
        %s395 = smul.addr %s394, 16
        %s396 = scalar_lea.vmem [#allocation10], %s395
        %p397 = pneg %p163
        %p398 = pneg %p160
        %p399 = pneg %p184
        %p400 = pneg %p181
        %p401 = pneg %p210
        %p402 = pneg %p207
        %s403 = sand.u32 %s197, 1
        %s404 = scalar_lea.sflag [#allocation6], %s403
        %s405 = sand.u32 %s197, 1
        %s406 = smul.addr %s405, 8
        %s407 = scalar_lea.vmem [#allocation12], %s406
        %s408 = sadd.s32 %s32, %s33
        %p409 = scmp.lt.s32.totalorder %s408, 0
        %s410 = scalar_select %p409, %s408, 0
        %s411 = smul.u32 2, %s410
        %s412 = sadd.s32 %s32, %s33
        %p413 = scmp.lt.s32.totalorder %s412, 0
        %s414 = scalar_select %p413, %s412, 0
        %s415 = smul.u32 2, %s414
        %s416 = sadd.s32 %s32, %s33
        %p417 = scmp.lt.s32.totalorder %s416, 0
        %s418 = scalar_select %p417, %s416, 0
        %s419 = smul.u32 2, %s418
        %s420 = sadd.s32 %s32, %s33
        %p421 = scmp.lt.s32.totalorder %s420, 0
        %s422 = scalar_select %p421, %s420, 0
        %s423 = smul.u32 2, %s422
        %p424 = scmp.eq.s32.totalorder %s33, 0
        // Predicated region
        $region57: #{tpu_custom_call.1} parent=39 // pred_check
          %p425 = pneg %p424
        $region58: #{tpu_custom_call.1} parent=39 // pred_check_branch
          %427 = sbr.rel (%p425) target = $region60
        $region59: #{tpu_custom_call.1} parent=39 // pred_region
          %vm428 = vcmask 162816
          %429 = vst.msk [vmem:[#allocation2] sm:$0xff] %vm428, 0.0
          %430 = vst.msk [vmem:[#allocation2 + $0x8] sm:$0xff] %vm428, 0.0
          %vm431 = vcmask 97280
          %432 = vst.msk [vmem:[#allocation3] sm:$0xff] %vm431, 0.0
          %433 = vst.msk [vmem:[#allocation3 + $0x8] sm:$0xff] %vm431, 0.0
        $region60: #{tpu_custom_call.1} parent=39 // pred_fallthru
          _
        %v434 = vld [vmem:[%s339] sm:$0xff]
        %v435 = vld [vmem:[%s339 + $0x8] sm:$0xff]
        %v436 = vld [vmem:[%s348] sm:$0xff]
        %v437 = vld [vmem:[%s348 + $0x8] sm:$0xff]
        %v438 = vld [vmem:[%s357] sm:$0xff]
        %v439 = vld [vmem:[%s357 + $0x8] sm:$0xff]
        %v440 = vld [vmem:[%s366] sm:$0xff]
        %v441 = vld [vmem:[%s366 + $0x8] sm:$0xff]
        %v442 = vld [vmem:[%s4] sm:$0x1]
        %v443 = vsub.f32 0.0, %v434
        %v444 = vsub.f32 0.0, %v435
        %v445 = vmax.f32 %v443, 0.0
        %v446 = vmax.f32 %v444, 0.0
        %v447 = vand.u32 2147483647, %v434
        %v448 = vand.u32 2147483647, %v435
        %v449 = vsub.f32 0.0, %v447
        %v450 = vsub.f32 0.0, %v448
        %v451 = vmul.f32 %v449, 1.442695
        %v452 = vpow.pop %v451
        %v453 = vmul.f32 %v450, 1.442695
        %v454 = vpow.pop %v453
        %v455 = vadd.f32 %v452, 1.0
        %v456 = vlog2.pop %v455
        %v457 = vmul.f32 %v456, 0.6931472
        %v458 = vmul.f32 -0.5, %v452
        %v459 = vadd.f32 %v458, 1.0
        %v460 = vmul.f32 %v459, %v452
        %v461 = vand.u32 2147483647, %v452
        %vm462 = vcmp.lt.f32.partialorder %v461, 0.0004427343
        %v463 = vsel %vm462, %v460, %v457
        %v464 = vadd.f32 %v454, 1.0
        %v465 = vlog2.pop %v464
        %v466 = vmul.f32 %v465, 0.6931472
        %v467 = vmul.f32 -0.5, %v454
        %v468 = vadd.f32 %v467, 1.0
        %v469 = vmul.f32 %v468, %v454
        %v470 = vand.u32 2147483647, %v454
        %vm471 = vcmp.lt.f32.partialorder %v470, 0.0004427343
        %v472 = vsel %vm471, %v469, %v466
        %v473 = vadd.f32 %v445, %v463
        %v474 = vadd.f32 %v446, %v472
        %v475 = vsub.f32 1.0, %v436
        %v476 = vsub.f32 1.0, %v437
        %v477 = vmul.f32 %v475, %v434
        %v478 = vmul.f32 %v476, %v435
        %v480 = vlaneseq
        %v481 = vshrl.u32 %v480, 7
        %v482 = vsub.s32 0, %v481
        %v483 = vrot.slane %v442, %v482
        %v485 = vmul.f32 %v483, %v436
        %v486 = vmul.f32 %v483, %v437
        %v487 = vadd.f32 %v485, 1.0
        %v488 = vadd.f32 %v486, 1.0
        %v489 = vmul.f32 %v487, %v473
        %v490 = vmul.f32 %v488, %v474
        %v491 = vadd.f32 %v477, %v489
        %v492 = vadd.f32 %v478, %v490
        %v493 = vsub.f32 0.0, %v438
        %v494 = vsub.f32 0.0, %v439
        %v495 = vmax.f32 %v493, 0.0
        %v496 = vmax.f32 %v494, 0.0
        %v497 = vand.u32 2147483647, %v438
        %v498 = vand.u32 2147483647, %v439
        %v499 = vsub.f32 0.0, %v497
        %v500 = vsub.f32 0.0, %v498
        %v501 = vmul.f32 %v499, 1.442695
        %v502 = vpow.pop %v501
        %v503 = vmul.f32 %v500, 1.442695
        %v504 = vpow.pop %v503
        %v505 = vadd.f32 %v502, 1.0
        %v506 = vlog2.pop %v505
        %v507 = vmul.f32 %v506, 0.6931472
        %v508 = vmul.f32 -0.5, %v502
        %v509 = vadd.f32 %v508, 1.0
        %v510 = vmul.f32 %v509, %v502
        %v511 = vand.u32 2147483647, %v502
        %vm512 = vcmp.lt.f32.partialorder %v511, 0.0004427343
        %v513 = vsel %vm512, %v510, %v507
        %v514 = vadd.f32 %v504, 1.0
        %v515 = vlog2.pop %v514
        %v516 = vmul.f32 %v515, 0.6931472
        %v517 = vmul.f32 -0.5, %v504
        %v518 = vadd.f32 %v517, 1.0
        %v519 = vmul.f32 %v518, %v504
        %v520 = vand.u32 2147483647, %v504
        %vm521 = vcmp.lt.f32.partialorder %v520, 0.0004427343
        %v522 = vsel %vm521, %v519, %v516
        %v523 = vadd.f32 %v495, %v513
        %v524 = vadd.f32 %v496, %v522
        %v525 = vsub.f32 1.0, %v440
        %v526 = vsub.f32 1.0, %v441
        %v527 = vmul.f32 %v525, %v438
        %v528 = vmul.f32 %v526, %v439
        %v529 = vadd.f32 %v527, %v523
        %v530 = vadd.f32 %v528, %v524
        %s531 = sadd.s32 %s32, %s33
        %s532 = smul.u32 %s531, 16
        %s533 = sadd.s32 %s532, 16
        %p534 = scmp.gt.s32.totalorder %s533, 10
        %p535 = scmp.le.s32.totalorder %s533, 10
        // Predicated region
        $region61: #{tpu_custom_call.1} parent=39 // pred_check
          %p536 = pneg %p535
        $region62: #{tpu_custom_call.1} parent=39 // pred_check_branch
          %538 = sbr.rel (%p536) target = $region64
        $region63: #{tpu_custom_call.1} parent=39 // pred_region
          %v539 = vld [vmem:[#allocation2] sm:$0xff]
          %v540 = vld [vmem:[#allocation2 + $0x8] sm:$0xff]
          %v541 = vadd.f32 %v539, %v491
          %v542 = vadd.f32 %v540, %v492
          %vm543 = vcmask 162816
          %544 = vst.msk [vmem:[#allocation2] sm:$0xff] %vm543, %v541
          %545 = vst.msk [vmem:[#allocation2 + $0x8] sm:$0xff] %vm543, %v542
          %v546 = vld [vmem:[#allocation3] sm:$0xff]
          %v547 = vld [vmem:[#allocation3 + $0x8] sm:$0xff]
          %v548 = vadd.f32 %v546, %v529
          %v549 = vadd.f32 %v547, %v530
          %vm550 = vcmask 97280
          %551 = vst.msk [vmem:[#allocation3] sm:$0xff] %vm550, %v548
          %552 = vst.msk [vmem:[#allocation3 + $0x8] sm:$0xff] %vm550, %v549
        $region64: #{tpu_custom_call.1} parent=39 // pred_fallthru
          _
        // Predicated region
        $region65: #{tpu_custom_call.1} parent=39 // pred_check
          %p553 = pneg %p534
        $region66: #{tpu_custom_call.1} parent=39 // pred_check_branch
          %555 = sbr.rel (%p553) target = $region68
        $region67: #{tpu_custom_call.1} parent=39 // pred_region
          %v556 = vlaneseq
          %v557 = vshrl.u32 %v556, 7
          %v558 = vadd.s32 %v557, 8
          %v559 = vstv %s532
          %v560 = vadd.s32 %v559, %v557
          %v561 = vadd.s32 %v559, %v558
          %vm562 = vcmp.lt.s32.totalorder %v560, 10
          %vm563 = vcmp.lt.s32.totalorder %v561, 10
          %v564 = vld [vmem:[#allocation2] sm:$0xff]
          %v565 = vld [vmem:[#allocation2 + $0x8] sm:$0xff]
          %v566 = vsel %vm562, 1, 0
          %v567 = vsel %vm563, 1, 0
          %vm568 = vcmp.eq.s32.totalorder %v566, 1
          %vm569 = vcmp.eq.s32.totalorder %v567, 1
          %v570 = vsel %vm568, %v491, 0.0
          %v571 = vsel %vm569, %v492, 0.0
          %v572 = vadd.f32 %v564, %v570
          %v573 = vadd.f32 %v565, %v571
          %vm574 = vcmask 162816
          %575 = vst.msk [vmem:[#allocation2] sm:$0xff] %vm574, %v572
          %576 = vst.msk [vmem:[#allocation2 + $0x8] sm:$0xff] %vm574, %v573
          %v577 = vld [vmem:[#allocation3] sm:$0xff]
          %v578 = vld [vmem:[#allocation3 + $0x8] sm:$0xff]
          %v579 = vsel %vm568, %v529, 0.0
          %v580 = vsel %vm569, %v530, 0.0
          %v581 = vadd.f32 %v577, %v579
          %v582 = vadd.f32 %v578, %v580
          %vm583 = vcmask 97280
          %584 = vst.msk [vmem:[#allocation3] sm:$0xff] %vm583, %v581
          %585 = vst.msk [vmem:[#allocation3 + $0x8] sm:$0xff] %vm583, %v582
        $region68: #{tpu_custom_call.1} parent=39 // pred_fallthru
          _
        // Predicated region
        $region69: #{tpu_custom_call.1} parent=39 // pred_check
          %p586 = pneg %p424
        $region70: #{tpu_custom_call.1} parent=39 // pred_check_branch
          %588 = sbr.rel (%p586) target = $region72
        $region71: #{tpu_custom_call.1} parent=39 // pred_region
          %v589 = vld [vmem:[#allocation2] sm:$0xff]
          %v590 = vld [vmem:[#allocation2 + $0x8] sm:$0xff]
          %vm591 = vcmask 162816
          %v592 = vsel %vm591, %v589, 0.0
          %v593 = vsel %vm591, %v590, 0.0
          %v594 = vadd.f32 %v592, %v593
          %595 = vadd.xlane.f32.xlu0 %v594
          %v596 = vpop.xlane.xlu0 %595
          %v597 = vrot.slane %v596, 4
          %v598 = vadd.f32 %v596, %v597
          %v599 = vrot.slane %v598, 2
          %v600 = vadd.f32 %v598, %v599
          %v601 = vrot.slane %v600, 1
          %v602 = vadd.f32 %v600, %v601
          %s603 = vtos %v602
          %s604 = smul.f32 %s603, 0.005
          %v605 = vld [vmem:[#allocation3] sm:$0xff]
          %v606 = vld [vmem:[#allocation3 + $0x8] sm:$0xff]
          %vm607 = vcmask 97280
          %v608 = vsel %vm607, %v605, 0.0
          %v609 = vsel %vm607, %v606, 0.0
          %v610 = vadd.f32 %v608, %v609
          %611 = vadd.xlane.f32.xlu0 %v610
          %v612 = vpop.xlane.xlu0 %611
          %v613 = vrot.slane %v612, 4
          %v614 = vadd.f32 %v612, %v613
          %v615 = vrot.slane %v614, 2
          %v616 = vadd.f32 %v614, %v615
          %v617 = vrot.slane %v616, 1
          %v618 = vadd.f32 %v616, %v617
          %s619 = vtos %v618
          %s620 = smul.f32 %s619, 0.004166667
          %s621 = sadd.f32 %s604, %s620
          %v622 = vstv %s621
          %623 = vst [vmem:[%s407] sm:$0xff] %v622
        $region72: #{tpu_custom_call.1} parent=39 // pred_fallthru
          _
        %s624 = sand.u32 %s197, 1
        %s625 = scalar_lea.sflag [#allocation6], %s624
        %s626 = sand.u32 %s197, 1
        %s627 = smul.addr %s626, 8
        %s628 = scalar_lea.vmem [#allocation12], %s627
        // Predicated region
        $region73: #{tpu_custom_call.1} parent=39 // pred_check
          %p629 = pneg %p207
        $region74: #{tpu_custom_call.1} parent=39 // pred_check_branch
          %631 = sbr.rel (%p629) target = $region76
        $region75: #{tpu_custom_call.1} parent=39 // pred_region
          %s633 = ssub.s32 128, 128
          %634 = vsyncadd %s625, %s633
          %s635 = smul.addr %s32, 128
          %s636 = scalar_lea.hbm %s5, %s635
          %s638 = sshll.u32 %s628, 4
          %s639 = int_to_ptr.vmem [resolvable:$true] %s638
          %641 = dma.vmem_to_hbm [thread:$0]  %s639, 128, %s636, %s625
        $region76: #{tpu_custom_call.1} parent=39 // pred_fallthru
          _
      $region40: #{tpu_custom_call.1} parent=5 // pred_fallthru
        _
      %p642 = scmp.le.s32.totalorder 2, %s23
      // Predicated region
      $region77: #{tpu_custom_call.1} parent=5 // pred_check
        %p643 = pneg %p642
      $region78: #{tpu_custom_call.1} parent=5 // pred_check_branch
        %645 = sbr.rel (%p643) target = $region80
      $region79: #{tpu_custom_call.1} parent=5 // pred_region
        %s646 = ssub.s32 %s23, 2
        // Predicated region
        $region81: #{tpu_custom_call.1} parent=79 // pred_check
          %p647 = pneg %p213
        $region82: #{tpu_custom_call.1} parent=79 // pred_check_branch
          %649 = sbr.rel (%p647) target = $region84
        $region83: #{tpu_custom_call.1} parent=79 // pred_region
          %s650 = sand.u32 %s198, 1
          %s651 = scalar_lea.sflag [#allocation6], %s650
          %s652 = sand.u32 %s198, 1
          %s653 = smul.addr %s652, 8
          %s654 = scalar_lea.vmem [#allocation12], %s653
          %655 = dma.done %s651, 128
        $region84: #{tpu_custom_call.1} parent=79 // pred_fallthru
          _
      $region80: #{tpu_custom_call.1} parent=5 // pred_fallthru
        _
    $region6: #{tpu_custom_call.1} parent=1 // loop_footer
      %s27 = sadd.s32 1, %s23
    $region7: #{tpu_custom_call.1} parent=1 // loop_footer_branch
      %22 = sbr.rel target = $region3
    $region8: #{tpu_custom_call.1} parent=1 // loop_exit
      _
    %656 = vsyncpa [#allocation5], 1
    %s657 = scalar_lea.sflag [#allocation5], 1
    %658 = vsyncpa %s657, 1
    %659 = vsyncpa [#allocation8], 1
    %s660 = scalar_lea.sflag [#allocation8], 1
    %661 = vsyncpa %s660, 1
    %662 = vsyncpa [#allocation11], 1
    %s663 = scalar_lea.sflag [#allocation11], 1
    %664 = vsyncpa %s663, 1
    %665 = vsyncpa [#allocation6], 1
    %s666 = scalar_lea.sflag [#allocation6], 1
    %667 = vsyncpa %s666, 1

</llo_original>
